<compile_context>
chip_gen: v7x
topology: tpu7x:2x2x1
jax: 0.10.0
libtpu: 0.0.40
codegen_flags: <defaults>
</compile_context>

<pallas_src>
import functools

import jax
import jax.numpy as jnp
from jax.experimental import pallas as pl
from jax.experimental.pallas import tpu as pltpu

_SMOOTHING = 0.1
_LOG_CLAMP = -100.0


def _bce_ls_block_kernel(p_ref, targets_ref, out_ref, rowd_ref, acc_ref, *, inv_n):
    """One (batch tile, entity tile) step. Accumulates the un-normalized partial loss
    for this batch block across entity tiles; finalizes on the last entity step."""
    j = pl.program_id(1)

    @pl.when(j == 0)
    def _():
        acc_ref[0, 0] = 0.0
        rowd_ref[...] = jnp.zeros_like(rowd_ref)

    p = p_ref[...].astype(jnp.float32)        # (TB, TN) probabilities
    tgts = targets_ref[...]                   # (TB, K)  int32 entity ids
    tn = p.shape[1]

    # BCELoss pieces with PyTorch's -100 log clamp (logs use the EUP slot).
    lp = jnp.maximum(jnp.log(p), _LOG_CLAMP)
    l1p = jnp.maximum(jnp.log(1.0 - p), _LOG_CLAMP)
    d = lp - l1p

    # Global entity index of each lane in this tile (iota hoisted out of the K-loop).
    iota_n = jax.lax.broadcasted_iota(jnp.int32, p.shape, 1) + j * tn

    # scatter_add_(1, tgts, ones) folded into the d accumulation. K is small and
    # static -> fully unrolled; no dense counts buffer, no (B, K, N) intermediate.
    # labels[:, 0] = 0 handled on the narrow column: 0 -> -1 never matches the iota.
    cd = jnp.zeros_like(p)
    for kk in range(tgts.shape[1]):
        tgt_k = tgts[:, kk:kk + 1]                       # (TB, 1)
        tgt_eff = jnp.where(tgt_k == 0, -1, tgt_k)
        cd = cd + jnp.where(tgt_eff == iota_n, d, 0.0)

    # Single dense combine + single full reduction for this tile.
    acc_ref[0, 0] += jnp.sum(l1p + (1.0 - _SMOOTHING) * cd)
    rowd_ref[...] += jnp.sum(d, axis=1, keepdims=True)   # (TB, 1), spans full N over j

    @pl.when(j == pl.num_programs(1) - 1)
    def _():
        # Per-row label count straight from the targets (column 0 excluded).
        row_counts = jnp.sum(jnp.where(tgts != 0, 1.0, 0.0), axis=1, keepdims=True)
        smooth = jnp.sum(row_counts * rowd_ref[...])
        out_ref[0, 0] = -(acc_ref[0, 0] + _SMOOTHING * inv_n * smooth)


def _choose_tiles(b, n):
    """Pick (padded_batch, batch_tile, entity_tile).

    Entity tile: a multiple of 128 dividing N (full N otherwise) so large vocabularies
    never collapse the batch tile or blow VMEM. Batch tile: ~2 MiB of f32 per block —
    safe under v5e's 16 MiB scoped-VMEM default and v7x's 64 MiB physical VMEM — with
    >= 2 batch blocks whenever B >= 16 so v7x's two TensorCores both get work."""
    tn = n
    for cand in (4096, 2048, 1024, 512, 256, 128):
        if n >= cand and n % cand == 0:
            tn = cand
            break

    budget_rows = max(8, (2 * 1024 * 1024) // (4 * tn))
    tb = None
    for cand in (512, 256, 128, 64, 32, 16, 8):
        if cand <= budget_rows and b % cand == 0 and (b // cand >= 2 or b < 16):
            tb = cand
            break
    if tb is None:
        if b < 16:
            tb = b                      # tiny batch: one full-extent block
        else:
            tb = 8
            for cand in (512, 256, 128, 64, 32, 16, 8):
                if cand <= budget_rows and -(-b // cand) >= 2:
                    tb = cand
                    break
    pad_b = -(-b // tb) * tb
    return pad_b, tb, tn


def bce_ls_loss(probs, targets):
    """probs: (B, N) probabilities in [0, 1] (the module's model_output['logits']);
    targets: (B, K) int32 entity ids. Returns BCELoss()(probs, smoothed multi-hot)."""
    b, n = probs.shape
    k = targets.shape[1]
    pad_b, tb, tn = _choose_tiles(b, n)

    if pad_b != b:
        # Padded rows (p = 0, target = 0) contribute exactly zero to every partial sum.
        probs = jnp.pad(probs, ((0, pad_b - b), (0, 0)))
        targets = jnp.pad(targets, ((0, pad_b - b), (0, 0)))

    num_bb = pad_b // tb
    num_nb = n // tn

    kernel = functools.partial(_bce_ls_block_kernel, inv_n=1.0 / n)

    cost = pl.CostEstimate(
        flops=pad_b * n * (3 * k + 8),        # scatter compares/selects/adds + loss algebra
        transcendentals=2 * pad_b * n,        # two logs per element
        bytes_accessed=pad_b * n * probs.dtype.itemsize + pad_b * k * 4 + num_bb * 4,
    )

    partials = pl.pallas_call(
        kernel,
        out_shape=jax.ShapeDtypeStruct((num_bb, 1), jnp.float32),
        grid=(num_bb, num_nb),
        in_specs=[
            pl.BlockSpec((tb, tn), lambda i, j: (i, j)),   # probability tile
            pl.BlockSpec((tb, k), lambda i, j: (i, 0)),    # targets tile (resident over j)
        ],
        out_specs=pl.BlockSpec((1, 1), lambda i, j: (i, 0),
                               memory_space=pltpu.MemorySpace.SMEM),
        scratch_shapes=[
            pltpu.VMEM((tb, 1), jnp.float32),   # row-sum of d accumulated over entity tiles
            pltpu.SMEM((1, 1), jnp.float32),    # running scalar partial for this batch block
        ],
        compiler_params=pltpu.CompilerParams(
            dimension_semantics=("parallel", "arbitrary")),  # batch || TCs, entity = reduce
        cost_estimate=cost,
    )(probs, targets)

    # Tiny (num_bb,) reduction + mean normalization in plain JAX.
    return jnp.sum(partials) / jnp.float32(b * n)


def bce_ls_reference(probs, targets, smoothing=_SMOOTHING):
    """Pure-JAX mirror of the PyTorch module (BCELoss incl. -100 clamp), for validation."""
    b, n = probs.shape
    labels = jnp.zeros((b, n), jnp.float32)
    ones = jnp.ones(targets.shape, jnp.float32)
    labels = jax.vmap(lambda l, i, o: l.at[i].add(o))(labels, targets, ones)
    labels = labels.at[:, 0].set(0.0)
    mean = labels.mean(axis=1, keepdims=True)
    labels = (1.0 - smoothing) * labels + smoothing * mean
    log_p = jnp.maximum(jnp.log(probs), _LOG_CLAMP)
    log_1mp = jnp.maximum(jnp.log(1.0 - probs), _LOG_CLAMP)
    return jnp.mean(-(labels * log_p + (1.0 - labels) * log_1mp))


if __name__ == "__main__":
    B, N, K = 2, 128, 8   # batch, num_entities (logits dim 1), targets per sample

    key = jax.random.PRNGKey(0)
    k_prob, k_tgt = jax.random.split(key)

    # The module feeds probabilities (post-sigmoid scores) to BCELoss.
    probs = jax.nn.sigmoid(jax.random.normal(k_prob, (B, N), dtype=jnp.float32))
    targets = jax.random.randint(k_tgt, (B, K), 0, N, dtype=jnp.int32)

    loss = bce_ls_loss(probs, targets)
    jax.block_until_ready(loss)

    ref = bce_ls_reference(probs, targets)
    assert jnp.allclose(loss, ref, rtol=1e-5, atol=1e-5), (loss, ref)

    print("KERNEL_OK")
</pallas_src>

<mosaic_0001>
module attributes {stable_mosaic.version = 11 : i64} {
  func.func @_bce_ls_block_kernel(%arg0: i32, %arg1: i32, %arg2: memref<2x128xf32, #tpu.memory_space<vmem>>, %arg3: memref<2x8xi32, #tpu.memory_space<vmem>>, %arg4: memref<1x1xf32, #tpu.memory_space<smem>>, %arg5: memref<2x1xf32, #tpu.memory_space<vmem>>, %arg6: memref<1x1xf32, #tpu.memory_space<smem>>) attributes {dimension_semantics = [#tpu.dimension_semantics<parallel>, #tpu.dimension_semantics<arbitrary>], iteration_bounds = array<i64: 1, 1>, scalar_prefetch = 0 : i64, scratch_operands = 2 : i64, tpu.core_type = #tpu.core_type<tc>, window_params = [{transform_indices = @transform_0, window_bounds = array<i64: 2, 128>}, {transform_indices = @transform_1, window_bounds = array<i64: 2, 8>}, {transform_indices = @transform_2, window_bounds = array<i64: 1, 1>}]} {
    %c0_i32 = arith.constant 0 : i32
    %0 = arith.cmpi eq, %arg1, %c0_i32 : i32
    %1 = arith.extui %0 : i1 to i32
    %c0_i32_0 = arith.constant 0 : i32
    %2 = arith.cmpi ne, %1, %c0_i32_0 : i32
    scf.if %2 {
      %cst_43 = arith.constant 0.000000e+00 : f32
      %c0_44 = arith.constant 0 : index
      %c0_45 = arith.constant 0 : index
      %117 = memref.load %arg6[%c0_44, %c0_45] : memref<1x1xf32, #tpu.memory_space<smem>>
      memref.store %cst_43, %arg6[%c0_44, %c0_45] : memref<1x1xf32, #tpu.memory_space<smem>>
      %cst_46 = arith.constant 0.000000e+00 : f32
      %118 = vector.broadcast %cst_46 : f32 to vector<2x1xf32>
      %c0_47 = arith.constant 0 : index
      %c0_48 = arith.constant 0 : index
      %119 = vector.load %arg5[%c0_47, %c0_48] : memref<2x1xf32, #tpu.memory_space<vmem>>, vector<2x1xf32>
      tpu.vector_store %arg5[%c0_47, %c0_48], %118 {strides = array<i32>} : memref<2x1xf32, #tpu.memory_space<vmem>>, vector<2x1xf32>,
    } else {
    }
    %c0 = arith.constant 0 : index
    %c0_1 = arith.constant 0 : index
    %3 = vector.load %arg2[%c0, %c0_1] : memref<2x128xf32, #tpu.memory_space<vmem>>, vector<2x128xf32>
    %c0_2 = arith.constant 0 : index
    %c0_3 = arith.constant 0 : index
    %4 = vector.load %arg3[%c0_2, %c0_3] : memref<2x8xi32, #tpu.memory_space<vmem>>, vector<2x8xi32>
    %5 = math.log %3 : vector<2x128xf32>
    %cst = arith.constant -1.000000e+02 : f32
    %6 = vector.broadcast %cst : f32 to vector<2x128xf32>
    %7 = arith.maximumf %5, %6 : vector<2x128xf32>
    %cst_4 = arith.constant 1.000000e+00 : f32
    %8 = vector.broadcast %cst_4 : f32 to vector<2x128xf32>
    %9 = arith.subf %8, %3 : vector<2x128xf32>
    %10 = math.log %9 : vector<2x128xf32>
    %cst_5 = arith.constant -1.000000e+02 : f32
    %11 = vector.broadcast %cst_5 : f32 to vector<2x128xf32>
    %12 = arith.maximumf %10, %11 : vector<2x128xf32>
    %13 = arith.subf %7, %12 : vector<2x128xf32>
    %14 = tpu.iota {dimensions = array<i32: 1>} : vector<2x128xi32>
    %c128_i32 = arith.constant 128 : i32
    %15 = arith.muli %arg1, %c128_i32 : i32
    %16 = vector.broadcast %15 : i32 to vector<2x128xi32>
    %17 = arith.addi %14, %16 : vector<2x128xi32>
    %cst_6 = arith.constant 0.000000e+00 : f32
    %18 = vector.broadcast %cst_6 : f32 to vector<2x128xf32>
    %19 = vector.extract_strided_slice %4 {offsets = [0, 0], sizes = [2, 1], strides = [1, 1]} : vector<2x8xi32> to vector<2x1xi32>
    %c0_i32_7 = arith.constant 0 : i32
    %20 = vector.broadcast %c0_i32_7 : i32 to vector<2x1xi32>
    %21 = arith.cmpi eq, %19, %20 : vector<2x1xi32>
    %c-1_i32 = arith.constant -1 : i32
    %22 = vector.broadcast %c-1_i32 : i32 to vector<2x1xi32>
    %23 = arith.select %21, %22, %19 : vector<2x1xi1>, vector<2x1xi32>
    %24 = vector.broadcast %23 : vector<2x1xi32> to vector<2x128xi32>
    %25 = arith.cmpi eq, %24, %17 : vector<2x128xi32>
    %cst_8 = arith.constant 0.000000e+00 : f32
    %26 = vector.broadcast %cst_8 : f32 to vector<2x128xf32>
    %27 = arith.select %25, %13, %26 : vector<2x128xi1>, vector<2x128xf32>
    %28 = arith.addf %18, %27 : vector<2x128xf32>
    %29 = vector.extract_strided_slice %4 {offsets = [0, 1], sizes = [2, 1], strides = [1, 1]} : vector<2x8xi32> to vector<2x1xi32>
    %c0_i32_9 = arith.constant 0 : i32
    %30 = vector.broadcast %c0_i32_9 : i32 to vector<2x1xi32>
    %31 = arith.cmpi eq, %29, %30 : vector<2x1xi32>
    %c-1_i32_10 = arith.constant -1 : i32
    %32 = vector.broadcast %c-1_i32_10 : i32 to vector<2x1xi32>
    %33 = arith.select %31, %32, %29 : vector<2x1xi1>, vector<2x1xi32>
    %34 = vector.broadcast %33 : vector<2x1xi32> to vector<2x128xi32>
    %35 = arith.cmpi eq, %34, %17 : vector<2x128xi32>
    %cst_11 = arith.constant 0.000000e+00 : f32
    %36 = vector.broadcast %cst_11 : f32 to vector<2x128xf32>
    %37 = arith.select %35, %13, %36 : vector<2x128xi1>, vector<2x128xf32>
    %38 = arith.addf %28, %37 : vector<2x128xf32>
    %39 = vector.extract_strided_slice %4 {offsets = [0, 2], sizes = [2, 1], strides = [1, 1]} : vector<2x8xi32> to vector<2x1xi32>
    %c0_i32_12 = arith.constant 0 : i32
    %40 = vector.broadcast %c0_i32_12 : i32 to vector<2x1xi32>
    %41 = arith.cmpi eq, %39, %40 : vector<2x1xi32>
    %c-1_i32_13 = arith.constant -1 : i32
    %42 = vector.broadcast %c-1_i32_13 : i32 to vector<2x1xi32>
    %43 = arith.select %41, %42, %39 : vector<2x1xi1>, vector<2x1xi32>
    %44 = vector.broadcast %43 : vector<2x1xi32> to vector<2x128xi32>
    %45 = arith.cmpi eq, %44, %17 : vector<2x128xi32>
    %cst_14 = arith.constant 0.000000e+00 : f32
    %46 = vector.broadcast %cst_14 : f32 to vector<2x128xf32>
    %47 = arith.select %45, %13, %46 : vector<2x128xi1>, vector<2x128xf32>
    %48 = arith.addf %38, %47 : vector<2x128xf32>
    %49 = vector.extract_strided_slice %4 {offsets = [0, 3], sizes = [2, 1], strides = [1, 1]} : vector<2x8xi32> to vector<2x1xi32>
    %c0_i32_15 = arith.constant 0 : i32
    %50 = vector.broadcast %c0_i32_15 : i32 to vector<2x1xi32>
    %51 = arith.cmpi eq, %49, %50 : vector<2x1xi32>
    %c-1_i32_16 = arith.constant -1 : i32
    %52 = vector.broadcast %c-1_i32_16 : i32 to vector<2x1xi32>
    %53 = arith.select %51, %52, %49 : vector<2x1xi1>, vector<2x1xi32>
    %54 = vector.broadcast %53 : vector<2x1xi32> to vector<2x128xi32>
    %55 = arith.cmpi eq, %54, %17 : vector<2x128xi32>
    %cst_17 = arith.constant 0.000000e+00 : f32
    %56 = vector.broadcast %cst_17 : f32 to vector<2x128xf32>
    %57 = arith.select %55, %13, %56 : vector<2x128xi1>, vector<2x128xf32>
    %58 = arith.addf %48, %57 : vector<2x128xf32>
    %59 = vector.extract_strided_slice %4 {offsets = [0, 4], sizes = [2, 1], strides = [1, 1]} : vector<2x8xi32> to vector<2x1xi32>
    %c0_i32_18 = arith.constant 0 : i32
    %60 = vector.broadcast %c0_i32_18 : i32 to vector<2x1xi32>
    %61 = arith.cmpi eq, %59, %60 : vector<2x1xi32>
    %c-1_i32_19 = arith.constant -1 : i32
    %62 = vector.broadcast %c-1_i32_19 : i32 to vector<2x1xi32>
    %63 = arith.select %61, %62, %59 : vector<2x1xi1>, vector<2x1xi32>
    %64 = vector.broadcast %63 : vector<2x1xi32> to vector<2x128xi32>
    %65 = arith.cmpi eq, %64, %17 : vector<2x128xi32>
    %cst_20 = arith.constant 0.000000e+00 : f32
    %66 = vector.broadcast %cst_20 : f32 to vector<2x128xf32>
    %67 = arith.select %65, %13, %66 : vector<2x128xi1>, vector<2x128xf32>
    %68 = arith.addf %58, %67 : vector<2x128xf32>
    %69 = vector.extract_strided_slice %4 {offsets = [0, 5], sizes = [2, 1], strides = [1, 1]} : vector<2x8xi32> to vector<2x1xi32>
    %c0_i32_21 = arith.constant 0 : i32
    %70 = vector.broadcast %c0_i32_21 : i32 to vector<2x1xi32>
    %71 = arith.cmpi eq, %69, %70 : vector<2x1xi32>
    %c-1_i32_22 = arith.constant -1 : i32
    %72 = vector.broadcast %c-1_i32_22 : i32 to vector<2x1xi32>
    %73 = arith.select %71, %72, %69 : vector<2x1xi1>, vector<2x1xi32>
    %74 = vector.broadcast %73 : vector<2x1xi32> to vector<2x128xi32>
    %75 = arith.cmpi eq, %74, %17 : vector<2x128xi32>
    %cst_23 = arith.constant 0.000000e+00 : f32
    %76 = vector.broadcast %cst_23 : f32 to vector<2x128xf32>
    %77 = arith.select %75, %13, %76 : vector<2x128xi1>, vector<2x128xf32>
    %78 = arith.addf %68, %77 : vector<2x128xf32>
    %79 = vector.extract_strided_slice %4 {offsets = [0, 6], sizes = [2, 1], strides = [1, 1]} : vector<2x8xi32> to vector<2x1xi32>
    %c0_i32_24 = arith.constant 0 : i32
    %80 = vector.broadcast %c0_i32_24 : i32 to vector<2x1xi32>
    %81 = arith.cmpi eq, %79, %80 : vector<2x1xi32>
    %c-1_i32_25 = arith.constant -1 : i32
    %82 = vector.broadcast %c-1_i32_25 : i32 to vector<2x1xi32>
    %83 = arith.select %81, %82, %79 : vector<2x1xi1>, vector<2x1xi32>
    %84 = vector.broadcast %83 : vector<2x1xi32> to vector<2x128xi32>
    %85 = arith.cmpi eq, %84, %17 : vector<2x128xi32>
    %cst_26 = arith.constant 0.000000e+00 : f32
    %86 = vector.broadcast %cst_26 : f32 to vector<2x128xf32>
    %87 = arith.select %85, %13, %86 : vector<2x128xi1>, vector<2x128xf32>
    %88 = arith.addf %78, %87 : vector<2x128xf32>
    %89 = vector.extract_strided_slice %4 {offsets = [0, 7], sizes = [2, 1], strides = [1, 1]} : vector<2x8xi32> to vector<2x1xi32>
    %c0_i32_27 = arith.constant 0 : i32
    %90 = vector.broadcast %c0_i32_27 : i32 to vector<2x1xi32>
    %91 = arith.cmpi eq, %89, %90 : vector<2x1xi32>
    %c-1_i32_28 = arith.constant -1 : i32
    %92 = vector.broadcast %c-1_i32_28 : i32 to vector<2x1xi32>
    %93 = arith.select %91, %92, %89 : vector<2x1xi1>, vector<2x1xi32>
    %94 = vector.broadcast %93 : vector<2x1xi32> to vector<2x128xi32>
    %95 = arith.cmpi eq, %94, %17 : vector<2x128xi32>
    %cst_29 = arith.constant 0.000000e+00 : f32
    %96 = vector.broadcast %cst_29 : f32 to vector<2x128xf32>
    %97 = arith.select %95, %13, %96 : vector<2x128xi1>, vector<2x128xf32>
    %98 = arith.addf %88, %97 : vector<2x128xf32>
    %c0_30 = arith.constant 0 : index
    %c0_31 = arith.constant 0 : index
    %99 = memref.load %arg6[%c0_30, %c0_31] : memref<1x1xf32, #tpu.memory_space<smem>>
    %cst_32 = arith.constant 0.899999976 : f32
    %100 = vector.broadcast %cst_32 : f32 to vector<2x128xf32>
    %101 = arith.mulf %100, %98 : vector<2x128xf32>
    %102 = arith.addf %12, %101 : vector<2x128xf32>
    %103 = vector.shape_cast %102 : vector<2x128xf32> to vector<1x2x128xf32>
    %cst_33 = arith.constant dense<0.000000e+00> : vector<1xf32>
    %104 = vector.multi_reduction <add>, %103, %cst_33 [1, 2] : vector<1x2x128xf32> to vector<1xf32>
    %105 = vector.shape_cast %104 : vector<1xf32> to vector<1x1x1xf32>
    %106 = vector.extract %105[0, 0, 0] : f32 from vector<1x1x1xf32>
    %107 = arith.addf %99, %106 : f32
    %c0_34 = arith.constant 0 : index
    %c0_35 = arith.constant 0 : index
    %108 = memref.load %arg6[%c0_34, %c0_35] : memref<1x1xf32, #tpu.memory_space<smem>>
    memref.store %107, %arg6[%c0_34, %c0_35] : memref<1x1xf32, #tpu.memory_space<smem>>
    %c0_36 = arith.constant 0 : index
    %c0_37 = arith.constant 0 : index
    %109 = vector.load %arg5[%c0_36, %c0_37] : memref<2x1xf32, #tpu.memory_space<vmem>>, vector<2x1xf32>
    %cst_38 = arith.constant dense<0.000000e+00> : vector<2xf32>
    %110 = vector.multi_reduction <add>, %13, %cst_38 [1] : vector<2x128xf32> to vector<2xf32>
    %111 = vector.shape_cast %110 : vector<2xf32> to vector<2x1xf32>
    %112 = arith.addf %109, %111 : vector<2x1xf32>
    %c0_39 = arith.constant 0 : index
    %c0_40 = arith.constant 0 : index
    %113 = vector.load %arg5[%c0_39, %c0_40] : memref<2x1xf32, #tpu.memory_space<vmem>>, vector<2x1xf32>
    tpu.vector_store %arg5[%c0_39, %c0_40], %112 {strides = array<i32>} : memref<2x1xf32, #tpu.memory_space<vmem>>, vector<2x1xf32>,
    %c0_i32_41 = arith.constant 0 : i32
    %114 = arith.cmpi eq, %arg1, %c0_i32_41 : i32
    %115 = arith.extui %114 : i1 to i32
    %c0_i32_42 = arith.constant 0 : i32
    %116 = arith.cmpi ne, %115, %c0_i32_42 : i32
    scf.if %116 {
      %c0_i32_43 = arith.constant 0 : i32
      %117 = vector.broadcast %c0_i32_43 : i32 to vector<2x8xi32>
      %118 = arith.cmpi ne, %4, %117 : vector<2x8xi32>
      %cst_44 = arith.constant 1.000000e+00 : f32
      %cst_45 = arith.constant 0.000000e+00 : f32
      %119 = vector.broadcast %cst_44 : f32 to vector<2x8xf32>
      %120 = vector.broadcast %cst_45 : f32 to vector<2x8xf32>
      %121 = arith.select %118, %119, %120 : vector<2x8xi1>, vector<2x8xf32>
      %cst_46 = arith.constant dense<0.000000e+00> : vector<2xf32>
      %122 = vector.multi_reduction <add>, %121, %cst_46 [1] : vector<2x8xf32> to vector<2xf32>
      %123 = vector.shape_cast %122 : vector<2xf32> to vector<2x1xf32>
      %c0_47 = arith.constant 0 : index
      %c0_48 = arith.constant 0 : index
      %124 = vector.load %arg5[%c0_47, %c0_48] : memref<2x1xf32, #tpu.memory_space<vmem>>, vector<2x1xf32>
      %125 = arith.mulf %123, %124 : vector<2x1xf32>
      %126 = vector.shape_cast %125 : vector<2x1xf32> to vector<1x2x1xf32>
      %cst_49 = arith.constant dense<0.000000e+00> : vector<1xf32>
      %127 = vector.multi_reduction <add>, %126, %cst_49 [1, 2] : vector<1x2x1xf32> to vector<1xf32>
      %128 = vector.shape_cast %127 : vector<1xf32> to vector<1x1x1xf32>
      %129 = vector.extract %128[0, 0, 0] : f32 from vector<1x1x1xf32>
      %c0_50 = arith.constant 0 : index
      %c0_51 = arith.constant 0 : index
      %130 = memref.load %arg6[%c0_50, %c0_51] : memref<1x1xf32, #tpu.memory_space<smem>>
      %cst_52 = arith.constant 7.812500e-04 : f32
      %131 = arith.mulf %cst_52, %129 : f32
      %132 = arith.addf %130, %131 : f32
      %cst_53 = arith.constant 0.000000e+00 : f32
      %133 = arith.subf %cst_53, %132 : f32
      %c0_54 = arith.constant 0 : index
      %c0_55 = arith.constant 0 : index
      %134 = memref.load %arg4[%c0_54, %c0_55] : memref<1x1xf32, #tpu.memory_space<smem>>
      memref.store %133, %arg4[%c0_54, %c0_55] : memref<1x1xf32, #tpu.memory_space<smem>>
    } else {
    }
    return
  }
  func.func @transform_0(%arg0: i32, %arg1: i32) -> (i32, i32) {
    %c0_i32 = arith.constant 0 : i32
    return %arg0, %arg1 : i32, i32
  }
  func.func @transform_1(%arg0: i32, %arg1: i32) -> (i32, i32) {
    %c0_i32 = arith.constant 0 : i32
    %c0_i32_0 = arith.constant 0 : i32
    return %arg0, %c0_i32 : i32, i32
  }
  func.func @transform_2(%arg0: i32, %arg1: i32) -> (i32, i32) {
    %c0_i32 = arith.constant 0 : i32
    %c0_i32_0 = arith.constant 0 : i32
    return %arg0, %c0_i32 : i32, i32
  }
}

</mosaic_0001>

<llo_original>
// kernel: tpu_custom_call.1
$region0: #{tpu_custom_call.1}
  #allocation0 [shape = 'u32[]', space=smem, size = 0x4, offset = 0x4, fixed_abs, tag = 'smem constant byte address 0x4 - core index']
  #allocation1 [shape = 'u32[144,128]{1,0:T(1,128)}', space=vmem, size = 0x12000, scoped, tag = 'internal scratch']
  #allocation2 [shape = 'f32[2,1]{1,0:T(2,128)}', space=vmem, size = 0x400, scoped, tag = 'scratch operand']
  #allocation3 [shape = 'f32[1,1]{1,0:T(1,128)}', space=smem, size = 0x200, scoped, tag = 'scratch operand']
  %s0 = inlined_call_operand.hbm [shape: f32[2,128], index: 0, kind: input, shape index: {}]
  %s1 = inlined_call_operand.vmem [shape: s32[2,8], index: 1, kind: input, shape index: {}]
  %s2 = inlined_call_operand.hbm [shape: f32[1,1], index: 2, kind: output, shape index: {}]
  %s3 = sld [smem:[#allocation0]]
  $region30: #{tpu_custom_call.1} parent=0
    _
  %s5 = ssub.s32 1, %s3
  %s6 = scalar_select 0, %s5, %s3
  $region1: #{tpu_custom_call.1} parent=0
    #allocation4 [shape = 'u8[1024]{0}', space=vmem, size = 0x400, scoped, tag = 'input window, operand 0, single buffered']
    #allocation5 [shape = 's32[1]{0}', space=sflag, size = 0x4, scoped, tag = 'scoped memory for tpu_custom_call.1']
    #allocation6 [shape = 's32[1]{0}', space=sflag, size = 0x4, scoped, tag = 'scoped memory for tpu_custom_call.1']
    #allocation7 [shape = 'u8[512]{0}', space=smem, size = 0x200, scoped, tag = 'output window, operand 0, single buffered']
    %7 = vsyncpa [#allocation5], 0
    %8 = vsyncpa [#allocation6], 0
    // Predicated region
    $region2: #{tpu_custom_call.1} parent=1 // pred_check
      _
    $region3: #{tpu_custom_call.1} parent=1 // pred_check_branch
      %10 = sbr.rel (0) target = $region5
    $region4: #{tpu_custom_call.1} parent=1 // pred_region
      %s12 = ssub.s32 32, 32
      %13 = vsyncadd [#allocation5], %s12
      %s15 = sshll.u32 [#allocation4], 4
      %s16 = int_to_ptr.vmem [resolvable:$true] %s15
      %18 = dma.hbm_to_vmem [thread:$0]  %s0, 32, %s16, [#allocation5]
    $region5: #{tpu_custom_call.1} parent=1 // pred_fallthru
      _
    // Predicated region
    $region6: #{tpu_custom_call.1} parent=1 // pred_check
      _
    $region7: #{tpu_custom_call.1} parent=1 // pred_check_branch
      %20 = sbr.rel (0) target = $region9
    $region8: #{tpu_custom_call.1} parent=1 // pred_region
      _
    $region9: #{tpu_custom_call.1} parent=1 // pred_fallthru
      _
    // Predicated region
    $region10: #{tpu_custom_call.1} parent=1 // pred_check
      _
    $region11: #{tpu_custom_call.1} parent=1 // pred_check_branch
      %22 = sbr.rel (0) target = $region13
    $region12: #{tpu_custom_call.1} parent=1 // pred_region
      %23 = dma.done [#allocation5], 32
    $region13: #{tpu_custom_call.1} parent=1 // pred_fallthru
      _
    %p24 = scmp.eq.s32.totalorder 0, 0
    // Predicated region
    $region14: #{tpu_custom_call.1} parent=1 // pred_check
      %p25 = pneg %p24
    $region15: #{tpu_custom_call.1} parent=1 // pred_check_branch
      %27 = sbr.rel (%p25) target = $region17
    $region16: #{tpu_custom_call.1} parent=1 // pred_region
      %s28 = scalar_lea.smem [#allocation3], 0
      %29 = sst [smem:[%s28]] 0.0
      %vm30 = vcmask 1024
      %31 = vst.msk [vmem:[#allocation2] sm:$0x3] %vm30, 0.0
    $region17: #{tpu_custom_call.1} parent=1 // pred_fallthru
      _
    %v32 = vld [vmem:[#allocation4] sm:$0x3]
    %v33 = vld [vmem:[%s1] sm:$0x3]
    %v34 = vlog2.pop %v32
    %v35 = vmul.f32 %v34, 0.6931472
    %v36 = vmax.f32 %v35, -100.0
    %v37 = vsub.f32 1.0, %v32
    %v38 = vlog2.pop %v37
    %v39 = vmul.f32 %v38, 0.6931472
    %v40 = vmax.f32 %v39, -100.0
    %v41 = vsub.f32 %v36, %v40
    %v42 = vlaneseq
    %v43 = vand.u32 %v42, 127
    %s44 = smul.u32 0, 128
    %v45 = vstv %s44
    %v46 = vadd.s32 %v43, %v45
    %vm47 = vcmp.eq.s32.totalorder %v33, 0
    %v48 = vsel %vm47, 4294967295, %v33
    %49 = vset.pattern.permute.xlu0 0
    %50 = vperm.xlu0 %49, %v48
    %v51 = vpop.permute.xlu0 %50
    %vm52 = vcmp.eq.s32.totalorder %v51, %v46
    %v53 = vsel %vm52, %v41, 0.0
    %v54 = vadd.f32 %v53, 0.0
    %55 = vset.pattern.permute.xlu0 1
    %56 = vperm.xlu0 %55, %v48
    %v57 = vpop.permute.xlu0 %56
    %vm58 = vcmp.eq.s32.totalorder %v57, %v46
    %v59 = vsel %vm58, %v41, 0.0
    %v60 = vadd.f32 %v54, %v59
    %61 = vset.pattern.permute.xlu0 2
    %62 = vperm.xlu0 %61, %v48
    %v63 = vpop.permute.xlu0 %62
    %vm64 = vcmp.eq.s32.totalorder %v63, %v46
    %v65 = vsel %vm64, %v41, 0.0
    %v66 = vadd.f32 %v60, %v65
    %67 = vset.pattern.permute.xlu0 3
    %68 = vperm.xlu0 %67, %v48
    %v69 = vpop.permute.xlu0 %68
    %vm70 = vcmp.eq.s32.totalorder %v69, %v46
    %v71 = vsel %vm70, %v41, 0.0
    %v72 = vadd.f32 %v66, %v71
    %73 = vset.pattern.permute.xlu0 4
    %74 = vperm.xlu0 %73, %v48
    %v75 = vpop.permute.xlu0 %74
    %vm76 = vcmp.eq.s32.totalorder %v75, %v46
    %v77 = vsel %vm76, %v41, 0.0
    %v78 = vadd.f32 %v72, %v77
    %79 = vset.pattern.permute.xlu0 5
    %80 = vperm.xlu0 %79, %v48
    %v81 = vpop.permute.xlu0 %80
    %vm82 = vcmp.eq.s32.totalorder %v81, %v46
    %v83 = vsel %vm82, %v41, 0.0
    %v84 = vadd.f32 %v78, %v83
    %85 = vset.pattern.permute.xlu0 6
    %86 = vperm.xlu0 %85, %v48
    %v87 = vpop.permute.xlu0 %86
    %vm88 = vcmp.eq.s32.totalorder %v87, %v46
    %v89 = vsel %vm88, %v41, 0.0
    %v90 = vadd.f32 %v84, %v89
    %91 = vset.pattern.permute.xlu0 7
    %92 = vperm.xlu0 %91, %v48
    %v93 = vpop.permute.xlu0 %92
    %vm94 = vcmp.eq.s32.totalorder %v93, %v46
    %v95 = vsel %vm94, %v41, 0.0
    %v96 = vadd.f32 %v90, %v95
    %s97 = sld [smem:[#allocation3]]
    %v98 = vmul.f32 %v96, 0.9
    %v99 = vadd.f32 %v40, %v98
    %vm100 = vcmask 1041408
    %v101 = vsel %vm100, %v99, 0.0
    %102 = vadd.xlane.f32.xlu0 %v101
    %v103 = vpop.xlane.xlu0 %102
    %v104 = vrot.slane %v103, 4
    %v105 = vadd.f32 %v103, %v104
    %v106 = vrot.slane %v105, 2
    %v107 = vadd.f32 %v105, %v106
    %v108 = vrot.slane %v107, 1
    %v109 = vadd.f32 %v107, %v108
    %s110 = vtos %v109
    %s111 = sadd.f32 %s97, %s110
    %s112 = scalar_lea.smem [#allocation3], 0
    %113 = sst [smem:[%s112]] %s111
    %v114 = vld [vmem:[#allocation2] sm:$0x3]
    %v115 = vsel %vm100, %v41, 0.0
    %116 = vadd.xlane.f32.xlu0 %v115
    %v117 = vpop.xlane.xlu0 %116
    %v118 = vadd.f32 %v114, %v117
    %vm119 = vcmask 1024
    %120 = vst.msk [vmem:[#allocation2] sm:$0x3] %vm119, %v118
    // Predicated region
    $region18: #{tpu_custom_call.1} parent=1 // pred_check
      %p121 = pneg %p24
    $region19: #{tpu_custom_call.1} parent=1 // pred_check_branch
      %123 = sbr.rel (%p121) target = $region21
    $region20: #{tpu_custom_call.1} parent=1 // pred_region
      %vm124 = vcmp.ne.s32.totalorder %v33, 0
      %v125 = vsel %vm124, 1.0, 0.0
      %vm126 = vcmask 58368
      %v127 = vsel %vm126, %v125, 0.0
      %128 = vadd.xlane.f32.xlu0 %v127
      %v129 = vpop.xlane.xlu0 %128
      %v130 = vld [vmem:[#allocation2] sm:$0x3]
      %v131 = vmul.f32 %v129, %v130
      %v132 = vsel %vm119, %v131, 0.0
      %133 = vadd.xlane.f32.xlu0 %v132
      %v134 = vpop.xlane.xlu0 %133
      %v135 = vrot.slane %v134, 4
      %v136 = vadd.f32 %v134, %v135
      %v137 = vrot.slane %v136, 2
      %v138 = vadd.f32 %v136, %v137
      %v139 = vrot.slane %v138, 1
      %v140 = vadd.f32 %v138, %v139
      %s141 = vtos %v140
      %s142 = sld [smem:[#allocation3]]
      %s143 = smul.f32 %s141, 0.00078125
      %s144 = sadd.f32 %s142, %s143
      %s145 = ssub.f32 0.0, %s144
      %s146 = scalar_lea.smem [#allocation7], 0
      %147 = sst [smem:[%s146]] %s145
    $region21: #{tpu_custom_call.1} parent=1 // pred_fallthru
      _
    // Predicated region
    $region22: #{tpu_custom_call.1} parent=1 // pred_check
      _
    $region23: #{tpu_custom_call.1} parent=1 // pred_check_branch
      %149 = sbr.rel (0) target = $region25
    $region24: #{tpu_custom_call.1} parent=1 // pred_region
      %s151 = ssub.s32 16, 16
      %152 = vsyncadd [#allocation6], %s151
      %155 = dma.smem_to_hbm [#allocation7], 16, %s2, [#allocation6]
    $region25: #{tpu_custom_call.1} parent=1 // pred_fallthru
      _
    // Predicated region
    $region26: #{tpu_custom_call.1} parent=1 // pred_check
      _
    $region27: #{tpu_custom_call.1} parent=1 // pred_check_branch
      %157 = sbr.rel (0) target = $region29
    $region28: #{tpu_custom_call.1} parent=1 // pred_region
      %158 = dma.done [#allocation6], 16
    $region29: #{tpu_custom_call.1} parent=1 // pred_fallthru
      _
    %159 = sfence
    %160 = vsyncpa [#allocation5], 1
    %161 = vsyncpa [#allocation6], 1

</llo_original>
